<compile_context>
chip_gen: v5e
topology: v5e:2x2
jax: 0.10.0
libtpu: 0.0.40
codegen_flags: <defaults>
</compile_context>

<pallas_src>
import functools

import jax
import jax.numpy as jnp
from jax.experimental import pallas as pl
from jax.experimental.pallas import tpu as pltpu


def _coordatt_kernel(x_ref, xc_ref,
                     w1a_ref, w1b_ref, w2a_ref, w2b_ref,
                     bn_ref, wy1_ref, wy2_ref, hb_ref,
                     ph_ref, pw_ref, eh_ref, ew_ref,
                     o_ref, *, bt):
    """Processes `bt` samples per grid step, all in the flat (C, H*W) layout.

    x_ref  : (bt, C, H*W)  NCHW activations, lane-dense
    xc_ref : (bt, H, W)    channel-aware pool (precomputed, f32)
    w1a/b  : (MIP, C) / (MIP, W)   conv1 columns for [x_h ; x_c^T]
    w2a/b  : (MIP, C) / (MIP, H)   conv2 columns for [x_w ; x_c]
    bn     : (MIP, 3)  columns = [BN scale, shift(branch1), shift(branch2)]
    wy1/2  : (OUP, MIP) attention heads; hb (OUP, 2) = [by1, by2]
    ph/pw  : (H*W, H) / (H*W, W)  averaging matrices (mean over W / over H)
    eh/ew  : (H, H*W) / (W, H*W)  one-hot broadcast matrices back to (C, H*W)
    """
    # Resident weights / constants: load once, hoisted out of the sample loop.
    w1a, w1b = w1a_ref[...], w1b_ref[...]
    w2a, w2b = w2a_ref[...], w2b_ref[...]
    bn = bn_ref[...]
    scale, sh1, sh2 = bn[:, 0:1], bn[:, 1:2], bn[:, 2:3]
    wy1, wy2 = wy1_ref[...], wy2_ref[...]
    hb = hb_ref[...]
    by1, by2 = hb[:, 0:1], hb[:, 1:2]
    ph, pw = ph_ref[...], pw_ref[...]
    eh, ew = eh_ref[...], ew_ref[...]

    for b in range(bt):                                  # bt is small & static
        xf = x_ref[b].astype(jnp.float32)                # (C, H*W), f32 math
        x_c = xc_ref[b]                                  # (H, W), already f32

        # Directional average pools as lane-group means (MXU, no reshape).
        x_h = jnp.dot(xf, ph, preferred_element_type=jnp.float32)   # (C, H)
        x_w = jnp.dot(xf, pw, preferred_element_type=jnp.float32)   # (C, W)

        # Branch 1: conv1(cat([x_h, x_c^T])) -> BN -> h_swish -> head -> a_h
        y1 = jnp.dot(w1a, x_h, preferred_element_type=jnp.float32)
        y1 = y1 + jnp.dot(w1b, x_c.T, preferred_element_type=jnp.float32)
        y1 = y1 * scale + sh1                                        # bias+BN
        y1 = y1 * (jnp.clip(y1 + 3.0, 0.0, 6.0) * (1.0 / 6.0))      # h_swish
        z1 = jnp.dot(wy1, y1, preferred_element_type=jnp.float32) + by1
        a_h = pl.reciprocal(1.0 + jnp.exp(-z1), approx=True)        # (OUP, H)

        # Branch 2: conv2(cat([x_w, x_c])) -> BN -> h_swish -> head -> a_w
        y2 = jnp.dot(w2a, x_w, preferred_element_type=jnp.float32)
        y2 = y2 + jnp.dot(w2b, x_c, preferred_element_type=jnp.float32)
        y2 = y2 * scale + sh2
        y2 = y2 * (jnp.clip(y2 + 3.0, 0.0, 6.0) * (1.0 / 6.0))
        z2 = jnp.dot(wy2, y2, preferred_element_type=jnp.float32) + by2
        a_w = pl.reciprocal(1.0 + jnp.exp(-z2), approx=True)        # (OUP, W)

        # Broadcast a_h / a_w into the flat (C, H*W) layout with one-hot
        # matmuls (ah_full[c, h*W+w'] = a_h[c, h]; aw_full[c, h*W+w'] = a_w[c, w'])
        ah_full = jnp.dot(a_h, eh, preferred_element_type=jnp.float32)
        aw_full = jnp.dot(a_w, ew, preferred_element_type=jnp.float32)

        # Fused modulation, stored lane-dense.
        o_ref[b] = (xf * ah_full * aw_full).astype(o_ref.dtype)


def _pick_bt(n, per_sample_bytes, target_bytes=2 << 20, max_unroll=8):
    """Samples per block: aim for ~2 MiB blocks, short unroll, >=2 grid steps."""
    bt = max(1, min(max_unroll, target_bytes // max(per_sample_bytes, 1)))
    if n >= 2:
        bt = min(bt, n // 2)      # keep >=2 grid steps (v7x has 2 TensorCores)
    bt = max(1, min(bt, n))
    while n % bt:                 # must evenly divide the batch
        bt -= 1
    return bt


@jax.jit
def channel_aware_coord_att(x, W1, b1, W2, b2, gamma, beta, run_mean, run_var,
                            Wy1, by1, Wy2, by2, eps=1e-5):
    n, c, h, w = x.shape
    hw = h * w
    mip = W1.shape[0]
    oup = Wy1.shape[0]

    if oup != c:
        raise ValueError(f"oup ({oup}) must equal input channels ({c}) for "
                         "the final x * a_h * a_w modulation")
    if W1.shape[1] != c + w or W2.shape[1] != c + h:
        raise ValueError("conv weight in-channels must equal c+w / c+h")

    # Lane-dense flat layout — free bitcast of contiguous NCHW.
    x_flat = x.reshape(n, c, hw)

    # Channel-aware pool (PyTorch: x.reshape(n,h,w,c) then mean over c),
    # accumulated in f32.  Cheap XLA reduction; only (n,h,w) enters the kernel.
    x_c = jnp.mean(x.reshape(n, h, w, c).astype(jnp.float32), axis=3)

    # Fold conv bias + eval-mode BatchNorm into one per-channel scale/shift.
    s = (gamma / jnp.sqrt(run_var + eps)).astype(jnp.float32)
    sh1 = (s * (b1 - run_mean) + beta).astype(jnp.float32)
    sh2 = (s * (b2 - run_mean) + beta).astype(jnp.float32)
    bn = jnp.stack([s, sh1, sh2], axis=1)                          # (mip, 3)
    hb = jnp.stack([by1, by2], axis=1).astype(jnp.float32)         # (oup, 2)

    # Split 1x1-conv weights so cat([a,b]) becomes two small matmuls.
    w1a = W1[:, :c].astype(jnp.float32)
    w1b = W1[:, c:c + w].astype(jnp.float32)
    w2a = W2[:, :c].astype(jnp.float32)
    w2b = W2[:, c:c + h].astype(jnp.float32)
    wy1 = Wy1.astype(jnp.float32)
    wy2 = Wy2.astype(jnp.float32)

    # Constant averaging / broadcast matrices for the flat (C, H*W) layout.
    eye_h = jnp.eye(h, dtype=jnp.float32)
    eye_w = jnp.eye(w, dtype=jnp.float32)
    ph = jnp.repeat(eye_h, w, axis=0) * (1.0 / w)                  # (hw, h)
    pw = jnp.tile(eye_w, (h, 1)) * (1.0 / h)                       # (hw, w)
    eh = jnp.repeat(eye_h, w, axis=1)                              # (h, hw)
    ew = jnp.tile(eye_w, (1, h))                                   # (w, hw)

    bt = _pick_bt(n, c * hw * x.dtype.itemsize)
    grid = (n // bt,)

    act_map = lambda i: (i, 0, 0)
    const = lambda i: (0, 0)

    # Advisory cost hint so XLA can overlap neighbours with this mem-bound op.
    macs = (2 * c * hw * (h + w)                       # pools + broadcasts
            + mip * ((c + w) * h + (c + h) * w)        # branch convs
            + oup * mip * (h + w))                     # attention heads
    cost = pl.CostEstimate(
        flops=int(n * (2 * macs + 4 * c * hw)),
        transcendentals=int(n * 2 * oup * (h + w)),
        bytes_accessed=int(2 * n * c * hw * x.dtype.itemsize + 4 * n * h * w
                           + 4 * (2 * mip * (c + h + w) + 2 * oup * mip
                                  + 2 * hw * (h + w))),
    )

    out_flat = pl.pallas_call(
        functools.partial(_coordatt_kernel, bt=bt),
        out_shape=jax.ShapeDtypeStruct((n, c, hw), x.dtype),
        grid_spec=pltpu.PrefetchScalarGridSpec(
            num_scalar_prefetch=0,
            grid=grid,
            in_specs=[
                pl.BlockSpec((bt, c, hw), act_map),
                pl.BlockSpec((bt, h, w), act_map),
                pl.BlockSpec((mip, c), const),
                pl.BlockSpec((mip, w), const),
                pl.BlockSpec((mip, c), const),
                pl.BlockSpec((mip, h), const),
                pl.BlockSpec((mip, 3), const),
                pl.BlockSpec((oup, mip), const),
                pl.BlockSpec((oup, mip), const),
                pl.BlockSpec((oup, 2), const),
                pl.BlockSpec((hw, h), const),
                pl.BlockSpec((hw, w), const),
                pl.BlockSpec((h, hw), const),
                pl.BlockSpec((w, hw), const),
            ],
            out_specs=pl.BlockSpec((bt, c, hw), act_map),
        ),
        compiler_params=pltpu.CompilerParams(
            dimension_semantics=("parallel",),
            vmem_limit_bytes=48 * 1024 * 1024,
        ),
        cost_estimate=cost,
    )(x_flat, x_c, w1a, w1b, w2a, w2b, bn, wy1, wy2, hb, ph, pw, eh, ew)

    return out_flat.reshape(n, c, h, w)


def _reference(x, W1, b1, W2, b2, gamma, beta, rm, rv, Wy1, by1, Wy2, by2,
               eps=1e-5):
    """Pure-JAX mirror of the PyTorch forward (eval-mode BN)."""
    n, c, h, w = x.shape

    def conv1x1(z, W, b):
        return jnp.einsum('oc,nchw->nohw', W, z) + b[None, :, None, None]

    def bn(z):
        s = gamma / jnp.sqrt(rv + eps)
        return z * s[None, :, None, None] + (beta - rm * s)[None, :, None, None]

    def hswish(z):
        return z * jnp.clip(z + 3.0, 0.0, 6.0) / 6.0

    x_h = jnp.mean(x, axis=3, keepdims=True)                               # (n,c,h,1)
    x_w = jnp.transpose(jnp.mean(x, axis=2, keepdims=True), (0, 1, 3, 2))  # (n,c,w,1)
    channel = x.reshape(n, h, w, c)
    x_c = jnp.mean(channel, axis=3, keepdims=True)                         # (n,h,w,1)
    temp = jnp.transpose(x_c, (0, 2, 1, 3))                                # (n,w,h,1)

    y1 = jnp.concatenate([x_h, temp], axis=1)                              # (n,c+w,h,1)
    y1 = hswish(bn(conv1x1(y1, W1, b1)))
    y2 = jnp.concatenate([x_w, x_c], axis=1)                               # (n,c+h,w,1)
    y2 = jnp.transpose(hswish(bn(conv1x1(y2, W2, b2))), (0, 1, 3, 2))      # (n,mip,1,w)
    a_h = jax.nn.sigmoid(conv1x1(y1, Wy1, by1))                            # (n,oup,h,1)
    a_w = jax.nn.sigmoid(conv1x1(y2, Wy2, by2))                            # (n,oup,1,w)
    return x * a_h * a_w


if __name__ == "__main__":
    key = jax.random.PRNGKey(0)
    # The PyTorch module requires h == w (concat channel counts) and oup == c.
    n, c, h, w = 2, 4, 16, 16
    inp = oup = c
    reduction = 32
    mip = max(8, (inp + h) // reduction)   # = 8

    ks = jax.random.split(key, 13)
    x     = jax.random.normal(ks[0], (n, c, h, w), dtype=jnp.float32)
    W1    = jax.random.normal(ks[1], (mip, inp + h), dtype=jnp.float32) * 0.2
    b1    = jax.random.normal(ks[2], (mip,), dtype=jnp.float32) * 0.1
    W2    = jax.random.normal(ks[3], (mip, inp + h), dtype=jnp.float32) * 0.2
    b2    = jax.random.normal(ks[4], (mip,), dtype=jnp.float32) * 0.1
    gamma = jax.random.uniform(ks[5], (mip,), dtype=jnp.float32, minval=0.5, maxval=1.5)
    beta  = jax.random.normal(ks[6], (mip,), dtype=jnp.float32) * 0.1
    rmean = jax.random.normal(ks[7], (mip,), dtype=jnp.float32) * 0.1
    rvar  = jax.random.uniform(ks[8], (mip,), dtype=jnp.float32, minval=0.5, maxval=1.5)
    Wy1   = jax.random.normal(ks[9],  (oup, mip), dtype=jnp.float32) * 0.2
    by1   = jax.random.normal(ks[10], (oup,), dtype=jnp.float32) * 0.1
    Wy2   = jax.random.normal(ks[11], (oup, mip), dtype=jnp.float32) * 0.2
    by2   = jax.random.normal(ks[12], (oup,), dtype=jnp.float32) * 0.1

    out = channel_aware_coord_att(x, W1, b1, W2, b2, gamma, beta, rmean, rvar,
                                  Wy1, by1, Wy2, by2)
    out = jax.block_until_ready(out)

    ref = _reference(x, W1, b1, W2, b2, gamma, beta, rmean, rvar,
                     Wy1, by1, Wy2, by2)
    assert out.shape == x.shape and out.dtype == x.dtype
    err = float(jnp.max(jnp.abs(out - ref)))
    assert jnp.allclose(out, ref, atol=5e-3, rtol=5e-3), f"max abs err {err}"

    print("KERNEL_OK")
</pallas_src>

<mosaic_0001>
module attributes {stable_mosaic.version = 11 : i64} {
  func.func @_coordatt_kernel(%arg0: i32, %arg1: memref<1x4x256xf32, #tpu.memory_space<vmem>>, %arg2: memref<1x16x16xf32, #tpu.memory_space<vmem>>, %arg3: memref<8x4xf32, #tpu.memory_space<vmem>>, %arg4: memref<8x16xf32, #tpu.memory_space<vmem>>, %arg5: memref<8x4xf32, #tpu.memory_space<vmem>>, %arg6: memref<8x16xf32, #tpu.memory_space<vmem>>, %arg7: memref<8x3xf32, #tpu.memory_space<vmem>>, %arg8: memref<4x8xf32, #tpu.memory_space<vmem>>, %arg9: memref<4x8xf32, #tpu.memory_space<vmem>>, %arg10: memref<4x2xf32, #tpu.memory_space<vmem>>, %arg11: memref<256x16xf32, #tpu.memory_space<vmem>>, %arg12: memref<256x16xf32, #tpu.memory_space<vmem>>, %arg13: memref<16x256xf32, #tpu.memory_space<vmem>>, %arg14: memref<16x256xf32, #tpu.memory_space<vmem>>, %arg15: memref<1x4x256xf32, #tpu.memory_space<vmem>>) attributes {dimension_semantics = [#tpu.dimension_semantics<parallel>], iteration_bounds = array<i64: 2>, scalar_prefetch = 0 : i64, scratch_operands = 0 : i64, tpu.core_type = #tpu.core_type<tc>, window_params = [{transform_indices = @transform_0, window_bounds = array<i64: 1, 4, 256>}, {transform_indices = @transform_1, window_bounds = array<i64: 1, 16, 16>}, {pipeline_mode = #tpu.pipeline_mode<synchronous>, transform_indices = @transform_2, window_bounds = array<i64: 8, 4>}, {pipeline_mode = #tpu.pipeline_mode<synchronous>, transform_indices = @transform_3, window_bounds = array<i64: 8, 16>}, {pipeline_mode = #tpu.pipeline_mode<synchronous>, transform_indices = @transform_4, window_bounds = array<i64: 8, 4>}, {pipeline_mode = #tpu.pipeline_mode<synchronous>, transform_indices = @transform_5, window_bounds = array<i64: 8, 16>}, {pipeline_mode = #tpu.pipeline_mode<synchronous>, transform_indices = @transform_6, window_bounds = array<i64: 8, 3>}, {pipeline_mode = #tpu.pipeline_mode<synchronous>, transform_indices = @transform_7, window_bounds = array<i64: 4, 8>}, {pipeline_mode = #tpu.pipeline_mode<synchronous>, transform_indices = @transform_8, window_bounds = array<i64: 4, 8>}, {pipeline_mode = #tpu.pipeline_mode<synchronous>, transform_indices = @transform_9, window_bounds = array<i64: 4, 2>}, {pipeline_mode = #tpu.pipeline_mode<synchronous>, transform_indices = @transform_10, window_bounds = array<i64: 256, 16>}, {pipeline_mode = #tpu.pipeline_mode<synchronous>, transform_indices = @transform_11, window_bounds = array<i64: 256, 16>}, {pipeline_mode = #tpu.pipeline_mode<synchronous>, transform_indices = @transform_12, window_bounds = array<i64: 16, 256>}, {pipeline_mode = #tpu.pipeline_mode<synchronous>, transform_indices = @transform_13, window_bounds = array<i64: 16, 256>}, {transform_indices = @transform_14, window_bounds = array<i64: 1, 4, 256>}]} {
    %c0 = arith.constant 0 : index
    %c0_0 = arith.constant 0 : index
    %0 = vector.load %arg3[%c0, %c0_0] : memref<8x4xf32, #tpu.memory_space<vmem>>, vector<8x4xf32>
    %c0_1 = arith.constant 0 : index
    %c0_2 = arith.constant 0 : index
    %1 = vector.load %arg4[%c0_1, %c0_2] : memref<8x16xf32, #tpu.memory_space<vmem>>, vector<8x16xf32>
    %c0_3 = arith.constant 0 : index
    %c0_4 = arith.constant 0 : index
    %2 = vector.load %arg5[%c0_3, %c0_4] : memref<8x4xf32, #tpu.memory_space<vmem>>, vector<8x4xf32>
    %c0_5 = arith.constant 0 : index
    %c0_6 = arith.constant 0 : index
    %3 = vector.load %arg6[%c0_5, %c0_6] : memref<8x16xf32, #tpu.memory_space<vmem>>, vector<8x16xf32>
    %c0_7 = arith.constant 0 : index
    %c0_8 = arith.constant 0 : index
    %4 = vector.load %arg7[%c0_7, %c0_8] : memref<8x3xf32, #tpu.memory_space<vmem>>, vector<8x3xf32>
    %5 = vector.extract_strided_slice %4 {offsets = [0, 0], sizes = [8, 1], strides = [1, 1]} : vector<8x3xf32> to vector<8x1xf32>
    %6 = vector.extract_strided_slice %4 {offsets = [0, 1], sizes = [8, 1], strides = [1, 1]} : vector<8x3xf32> to vector<8x1xf32>
    %7 = vector.extract_strided_slice %4 {offsets = [0, 2], sizes = [8, 1], strides = [1, 1]} : vector<8x3xf32> to vector<8x1xf32>
    %c0_9 = arith.constant 0 : index
    %c0_10 = arith.constant 0 : index
    %8 = vector.load %arg8[%c0_9, %c0_10] : memref<4x8xf32, #tpu.memory_space<vmem>>, vector<4x8xf32>
    %c0_11 = arith.constant 0 : index
    %c0_12 = arith.constant 0 : index
    %9 = vector.load %arg9[%c0_11, %c0_12] : memref<4x8xf32, #tpu.memory_space<vmem>>, vector<4x8xf32>
    %c0_13 = arith.constant 0 : index
    %c0_14 = arith.constant 0 : index
    %10 = vector.load %arg10[%c0_13, %c0_14] : memref<4x2xf32, #tpu.memory_space<vmem>>, vector<4x2xf32>
    %11 = vector.extract_strided_slice %10 {offsets = [0, 0], sizes = [4, 1], strides = [1, 1]} : vector<4x2xf32> to vector<4x1xf32>
    %12 = vector.extract_strided_slice %10 {offsets = [0, 1], sizes = [4, 1], strides = [1, 1]} : vector<4x2xf32> to vector<4x1xf32>
    %c0_15 = arith.constant 0 : index
    %c0_16 = arith.constant 0 : index
    %13 = vector.load %arg11[%c0_15, %c0_16] : memref<256x16xf32, #tpu.memory_space<vmem>>, vector<256x16xf32>
    %c0_17 = arith.constant 0 : index
    %c0_18 = arith.constant 0 : index
    %14 = vector.load %arg12[%c0_17, %c0_18] : memref<256x16xf32, #tpu.memory_space<vmem>>, vector<256x16xf32>
    %c0_19 = arith.constant 0 : index
    %c0_20 = arith.constant 0 : index
    %15 = vector.load %arg13[%c0_19, %c0_20] : memref<16x256xf32, #tpu.memory_space<vmem>>, vector<16x256xf32>
    %c0_21 = arith.constant 0 : index
    %c0_22 = arith.constant 0 : index
    %16 = vector.load %arg14[%c0_21, %c0_22] : memref<16x256xf32, #tpu.memory_space<vmem>>, vector<16x256xf32>
    %c0_23 = arith.constant 0 : index
    %c0_24 = arith.constant 0 : index
    %c0_25 = arith.constant 0 : index
    %17 = vector.load %arg1[%c0_23, %c0_24, %c0_25] : memref<1x4x256xf32, #tpu.memory_space<vmem>>, vector<1x4x256xf32>
    %18 = vector.shape_cast %17 : vector<1x4x256xf32> to vector<4x256xf32>
    %c0_26 = arith.constant 0 : index
    %c0_27 = arith.constant 0 : index
    %c0_28 = arith.constant 0 : index
    %19 = vector.load %arg2[%c0_26, %c0_27, %c0_28] : memref<1x16x16xf32, #tpu.memory_space<vmem>>, vector<1x16x16xf32>
    %20 = vector.shape_cast %19 : vector<1x16x16xf32> to vector<16x16xf32>
    %cst = arith.constant dense<0.000000e+00> : vector<4x16xf32>
    %21 = tpu.matmul %18, %13, %cst {dimension_numbers = #tpu.dot_dimension_numbers<[1], [0], [0], [1], [0, 0, 1, 1], [], []>} : vector<4x256xf32>, vector<256x16xf32>, vector<4x16xf32> -> vector<4x16xf32>
    %cst_29 = arith.constant dense<0.000000e+00> : vector<4x16xf32>
    %22 = tpu.matmul %18, %14, %cst_29 {dimension_numbers = #tpu.dot_dimension_numbers<[1], [0], [0], [1], [0, 0, 1, 1], [], []>} : vector<4x256xf32>, vector<256x16xf32>, vector<4x16xf32> -> vector<4x16xf32>
    %cst_30 = arith.constant dense<0.000000e+00> : vector<8x16xf32>
    %23 = tpu.matmul %0, %21, %cst_30 {dimension_numbers = #tpu.dot_dimension_numbers<[1], [0], [0], [1], [0, 0, 1, 1], [], []>} : vector<8x4xf32>, vector<4x16xf32>, vector<8x16xf32> -> vector<8x16xf32>
    %24 = tpu.transpose %20, [1, 0] : vector<16x16xf32> -> vector<16x16xf32>
    %cst_31 = arith.constant dense<0.000000e+00> : vector<8x16xf32>
    %25 = tpu.matmul %1, %24, %cst_31 {dimension_numbers = #tpu.dot_dimension_numbers<[1], [0], [0], [1], [0, 0, 1, 1], [], []>} : vector<8x16xf32>, vector<16x16xf32>, vector<8x16xf32> -> vector<8x16xf32>
    %26 = arith.addf %23, %25 : vector<8x16xf32>
    %27 = vector.broadcast %5 : vector<8x1xf32> to vector<8x16xf32>
    %28 = arith.mulf %26, %27 : vector<8x16xf32>
    %29 = vector.broadcast %6 : vector<8x1xf32> to vector<8x16xf32>
    %30 = arith.addf %28, %29 : vector<8x16xf32>
    %cst_32 = arith.constant 3.000000e+00 : f32
    %31 = vector.broadcast %cst_32 : f32 to vector<8x16xf32>
    %32 = arith.addf %30, %31 : vector<8x16xf32>
    %cst_33 = arith.constant 0.000000e+00 : f32
    %cst_34 = arith.constant 6.000000e+00 : f32
    %33 = vector.broadcast %cst_33 : f32 to vector<8x16xf32>
    %34 = arith.maximumf %33, %32 : vector<8x16xf32>
    %35 = vector.broadcast %cst_34 : f32 to vector<8x16xf32>
    %36 = arith.minimumf %35, %34 : vector<8x16xf32>
    %cst_35 = arith.constant 0.166666672 : f32
    %37 = vector.broadcast %cst_35 : f32 to vector<8x16xf32>
    %38 = arith.mulf %36, %37 : vector<8x16xf32>
    %39 = arith.mulf %30, %38 : vector<8x16xf32>
    %cst_36 = arith.constant dense<0.000000e+00> : vector<4x16xf32>
    %40 = tpu.matmul %8, %39, %cst_36 {dimension_numbers = #tpu.dot_dimension_numbers<[1], [0], [0], [1], [0, 0, 1, 1], [], []>} : vector<4x8xf32>, vector<8x16xf32>, vector<4x16xf32> -> vector<4x16xf32>
    %41 = vector.broadcast %11 : vector<4x1xf32> to vector<4x16xf32>
    %42 = arith.addf %40, %41 : vector<4x16xf32>
    %cst_37 = arith.constant 0.000000e+00 : f32
    %43 = vector.broadcast %cst_37 : f32 to vector<4x16xf32>
    %44 = arith.subf %43, %42 : vector<4x16xf32>
    %45 = math.exp %44 : vector<4x16xf32>
    %cst_38 = arith.constant 1.000000e+00 : f32
    %46 = vector.broadcast %cst_38 : f32 to vector<4x16xf32>
    %47 = arith.addf %46, %45 : vector<4x16xf32>
    %48 = tpu.reciprocal %47 {approx = true} : vector<4x16xf32> -> vector<4x16xf32>
    %cst_39 = arith.constant dense<0.000000e+00> : vector<8x16xf32>
    %49 = tpu.matmul %2, %22, %cst_39 {dimension_numbers = #tpu.dot_dimension_numbers<[1], [0], [0], [1], [0, 0, 1, 1], [], []>} : vector<8x4xf32>, vector<4x16xf32>, vector<8x16xf32> -> vector<8x16xf32>
    %cst_40 = arith.constant dense<0.000000e+00> : vector<8x16xf32>
    %50 = tpu.matmul %3, %20, %cst_40 {dimension_numbers = #tpu.dot_dimension_numbers<[1], [0], [0], [1], [0, 0, 1, 1], [], []>} : vector<8x16xf32>, vector<16x16xf32>, vector<8x16xf32> -> vector<8x16xf32>
    %51 = arith.addf %49, %50 : vector<8x16xf32>
    %52 = vector.broadcast %5 : vector<8x1xf32> to vector<8x16xf32>
    %53 = arith.mulf %51, %52 : vector<8x16xf32>
    %54 = vector.broadcast %7 : vector<8x1xf32> to vector<8x16xf32>
    %55 = arith.addf %53, %54 : vector<8x16xf32>
    %cst_41 = arith.constant 3.000000e+00 : f32
    %56 = vector.broadcast %cst_41 : f32 to vector<8x16xf32>
    %57 = arith.addf %55, %56 : vector<8x16xf32>
    %cst_42 = arith.constant 0.000000e+00 : f32
    %cst_43 = arith.constant 6.000000e+00 : f32
    %58 = vector.broadcast %cst_42 : f32 to vector<8x16xf32>
    %59 = arith.maximumf %58, %57 : vector<8x16xf32>
    %60 = vector.broadcast %cst_43 : f32 to vector<8x16xf32>
    %61 = arith.minimumf %60, %59 : vector<8x16xf32>
    %cst_44 = arith.constant 0.166666672 : f32
    %62 = vector.broadcast %cst_44 : f32 to vector<8x16xf32>
    %63 = arith.mulf %61, %62 : vector<8x16xf32>
    %64 = arith.mulf %55, %63 : vector<8x16xf32>
    %cst_45 = arith.constant dense<0.000000e+00> : vector<4x16xf32>
    %65 = tpu.matmul %9, %64, %cst_45 {dimension_numbers = #tpu.dot_dimension_numbers<[1], [0], [0], [1], [0, 0, 1, 1], [], []>} : vector<4x8xf32>, vector<8x16xf32>, vector<4x16xf32> -> vector<4x16xf32>
    %66 = vector.broadcast %12 : vector<4x1xf32> to vector<4x16xf32>
    %67 = arith.addf %65, %66 : vector<4x16xf32>
    %cst_46 = arith.constant 0.000000e+00 : f32
    %68 = vector.broadcast %cst_46 : f32 to vector<4x16xf32>
    %69 = arith.subf %68, %67 : vector<4x16xf32>
    %70 = math.exp %69 : vector<4x16xf32>
    %cst_47 = arith.constant 1.000000e+00 : f32
    %71 = vector.broadcast %cst_47 : f32 to vector<4x16xf32>
    %72 = arith.addf %71, %70 : vector<4x16xf32>
    %73 = tpu.reciprocal %72 {approx = true} : vector<4x16xf32> -> vector<4x16xf32>
    %cst_48 = arith.constant dense<0.000000e+00> : vector<4x256xf32>
    %74 = tpu.matmul %48, %15, %cst_48 {dimension_numbers = #tpu.dot_dimension_numbers<[1], [0], [0], [1], [0, 0, 1, 1], [], []>} : vector<4x16xf32>, vector<16x256xf32>, vector<4x256xf32> -> vector<4x256xf32>
    %cst_49 = arith.constant dense<0.000000e+00> : vector<4x256xf32>
    %75 = tpu.matmul %73, %16, %cst_49 {dimension_numbers = #tpu.dot_dimension_numbers<[1], [0], [0], [1], [0, 0, 1, 1], [], []>} : vector<4x16xf32>, vector<16x256xf32>, vector<4x256xf32> -> vector<4x256xf32>
    %76 = arith.mulf %18, %74 : vector<4x256xf32>
    %77 = arith.mulf %76, %75 : vector<4x256xf32>
    %c0_50 = arith.constant 0 : index
    %c0_51 = arith.constant 0 : index
    %c0_52 = arith.constant 0 : index
    %78 = vector.load %arg15[%c0_50, %c0_51, %c0_52] : memref<1x4x256xf32, #tpu.memory_space<vmem>>, vector<1x4x256xf32>
    %79 = vector.shape_cast %78 : vector<1x4x256xf32> to vector<4x256xf32>
    %80 = vector.shape_cast %77 : vector<4x256xf32> to vector<1x4x256xf32>
    tpu.vector_store %arg15[%c0_50, %c0_51, %c0_52], %80 {strides = array<i32>} : memref<1x4x256xf32, #tpu.memory_space<vmem>>, vector<1x4x256xf32>,
    return
  }
  func.func @transform_0(%arg0: i32) -> (i32, i32, i32) {
    %c0_i32 = arith.constant 0 : i32
    %c0_i32_0 = arith.constant 0 : i32
    %c0_i32_1 = arith.constant 0 : i32
    return %arg0, %c0_i32, %c0_i32_0 : i32, i32, i32
  }
  func.func @transform_1(%arg0: i32) -> (i32, i32, i32) {
    %c0_i32 = arith.constant 0 : i32
    %c0_i32_0 = arith.constant 0 : i32
    %c0_i32_1 = arith.constant 0 : i32
    return %arg0, %c0_i32, %c0_i32_0 : i32, i32, i32
  }
  func.func @transform_2(%arg0: i32) -> (i32, i32) {
    %c0_i32 = arith.constant 0 : i32
    %c0_i32_0 = arith.constant 0 : i32
    %c0_i32_1 = arith.constant 0 : i32
    return %c0_i32, %c0_i32_0 : i32, i32
  }
  func.func @transform_3(%arg0: i32) -> (i32, i32) {
    %c0_i32 = arith.constant 0 : i32
    %c0_i32_0 = arith.constant 0 : i32
    %c0_i32_1 = arith.constant 0 : i32
    return %c0_i32, %c0_i32_0 : i32, i32
  }
  func.func @transform_4(%arg0: i32) -> (i32, i32) {
    %c0_i32 = arith.constant 0 : i32
    %c0_i32_0 = arith.constant 0 : i32
    %c0_i32_1 = arith.constant 0 : i32
    return %c0_i32, %c0_i32_0 : i32, i32
  }
  func.func @transform_5(%arg0: i32) -> (i32, i32) {
    %c0_i32 = arith.constant 0 : i32
    %c0_i32_0 = arith.constant 0 : i32
    %c0_i32_1 = arith.constant 0 : i32
    return %c0_i32, %c0_i32_0 : i32, i32
  }
  func.func @transform_6(%arg0: i32) -> (i32, i32) {
    %c0_i32 = arith.constant 0 : i32
    %c0_i32_0 = arith.constant 0 : i32
    %c0_i32_1 = arith.constant 0 : i32
    return %c0_i32, %c0_i32_0 : i32, i32
  }
  func.func @transform_7(%arg0: i32) -> (i32, i32) {
    %c0_i32 = arith.constant 0 : i32
    %c0_i32_0 = arith.constant 0 : i32
    %c0_i32_1 = arith.constant 0 : i32
    return %c0_i32, %c0_i32_0 : i32, i32
  }
  func.func @transform_8(%arg0: i32) -> (i32, i32) {
    %c0_i32 = arith.constant 0 : i32
    %c0_i32_0 = arith.constant 0 : i32
    %c0_i32_1 = arith.constant 0 : i32
    return %c0_i32, %c0_i32_0 : i32, i32
  }
  func.func @transform_9(%arg0: i32) -> (i32, i32) {
    %c0_i32 = arith.constant 0 : i32
    %c0_i32_0 = arith.constant 0 : i32
    %c0_i32_1 = arith.constant 0 : i32
    return %c0_i32, %c0_i32_0 : i32, i32
  }
  func.func @transform_10(%arg0: i32) -> (i32, i32) {
    %c0_i32 = arith.constant 0 : i32
    %c0_i32_0 = arith.constant 0 : i32
    %c0_i32_1 = arith.constant 0 : i32
    return %c0_i32, %c0_i32_0 : i32, i32
  }
  func.func @transform_11(%arg0: i32) -> (i32, i32) {
    %c0_i32 = arith.constant 0 : i32
    %c0_i32_0 = arith.constant 0 : i32
    %c0_i32_1 = arith.constant 0 : i32
    return %c0_i32, %c0_i32_0 : i32, i32
  }
  func.func @transform_12(%arg0: i32) -> (i32, i32) {
    %c0_i32 = arith.constant 0 : i32
    %c0_i32_0 = arith.constant 0 : i32
    %c0_i32_1 = arith.constant 0 : i32
    return %c0_i32, %c0_i32_0 : i32, i32
  }
  func.func @transform_13(%arg0: i32) -> (i32, i32) {
    %c0_i32 = arith.constant 0 : i32
    %c0_i32_0 = arith.constant 0 : i32
    %c0_i32_1 = arith.constant 0 : i32
    return %c0_i32, %c0_i32_0 : i32, i32
  }
  func.func @transform_14(%arg0: i32) -> (i32, i32, i32) {
    %c0_i32 = arith.constant 0 : i32
    %c0_i32_0 = arith.constant 0 : i32
    %c0_i32_1 = arith.constant 0 : i32
    return %arg0, %c0_i32, %c0_i32_0 : i32, i32, i32
  }
}

</mosaic_0001>

<llo_original>
// kernel: channel_aware_coord_att.1
$region0: #{channel_aware_coord_att.1}
  #allocation0 [shape = 'u32[]', space=smem, size = 0x4, offset = 0x4, fixed_abs, tag = 'smem constant byte address 0x4 - core index']
  #allocation1 [shape = 'u32[72,128]{1,0:T(1,128)}', space=vmem, size = 0x9000, scoped, tag = 'internal scratch']
  %s0 = inlined_call_operand.vmem [shape: f32[2,4,256], index: 0, kind: input, shape index: {}]
  %s1 = inlined_call_operand.vmem [shape: f32[2,16,16], index: 1, kind: input, shape index: {}]
  %s2 = inlined_call_operand.vmem [shape: f32[8,4], index: 2, kind: input, shape index: {}]
  %s3 = inlined_call_operand.vmem [shape: f32[8,16], index: 3, kind: input, shape index: {}]
  %s4 = inlined_call_operand.vmem [shape: f32[8,4], index: 4, kind: input, shape index: {}]
  %s5 = inlined_call_operand.vmem [shape: f32[8,16], index: 5, kind: input, shape index: {}]
  %s6 = inlined_call_operand.vmem [shape: f32[8,3], index: 6, kind: input, shape index: {}]
  %s7 = inlined_call_operand.vmem [shape: f32[4,8], index: 7, kind: input, shape index: {}]
  %s8 = inlined_call_operand.vmem [shape: f32[4,8], index: 8, kind: input, shape index: {}]
  %s9 = inlined_call_operand.vmem [shape: f32[4,2], index: 9, kind: input, shape index: {}]
  %s10 = inlined_call_operand.vmem [shape: f32[256,16], index: 10, kind: input, shape index: {}]
  %s11 = inlined_call_operand.vmem [shape: f32[256,16], index: 11, kind: input, shape index: {}]
  %s12 = inlined_call_operand.vmem [shape: f32[16,256], index: 12, kind: input, shape index: {}]
  %s13 = inlined_call_operand.vmem [shape: f32[16,256], index: 13, kind: input, shape index: {}]
  %s14 = inlined_call_operand.vmem [shape: f32[2,4,256], index: 14, kind: output, shape index: {}]
  %s15 = sld [smem:[#allocation0]]
  $region89: #{channel_aware_coord_att.1} parent=0
    _
  %s17 = ssub.s32 1, %s15
  %s18 = scalar_select 0, %s17, %s15
  loop: start=0, step=1, limit=4
  $region2: #{channel_aware_coord_att.1} parent=0 // loop_pre_header
    _
  $region3: #{channel_aware_coord_att.1} parent=0 // loop_header
    %s20 = sphi 0, %s24
    %p21 = scmp.ge.s32.totalorder %s20, 4
    %s30 = sphi 0, %s32
    %s33 = sphi 0, %s30
    %s34 = sphi 0, %s33
    %s50 = sphi 0, %s34
    %s56 = sphi 0, %s58
    %s59 = sphi 0, %s56
    %s60 = sphi 0, %s59
    %s76 = sphi 0, %s60
    %s80 = sphi 0, %s80
    %s82 = sphi 0, %s80
    %s83 = sphi 0, %s82
    %s97 = sphi 0, %s83
    %s101 = sphi 0, %s101
    %s103 = sphi 0, %s101
    %s104 = sphi 0, %s103
    %s118 = sphi 0, %s104
    %s122 = sphi 0, %s122
    %s124 = sphi 0, %s122
    %s125 = sphi 0, %s124
    %s139 = sphi 0, %s125
    %s143 = sphi 0, %s143
    %s145 = sphi 0, %s143
    %s146 = sphi 0, %s145
    %s160 = sphi 0, %s146
    %s164 = sphi 0, %s164
    %s166 = sphi 0, %s164
    %s167 = sphi 0, %s166
    %s181 = sphi 0, %s167
    %s185 = sphi 0, %s185
    %s187 = sphi 0, %s185
    %s188 = sphi 0, %s187
    %s202 = sphi 0, %s188
    %s206 = sphi 0, %s206
    %s208 = sphi 0, %s206
    %s209 = sphi 0, %s208
    %s223 = sphi 0, %s209
    %s227 = sphi 0, %s227
    %s229 = sphi 0, %s227
    %s230 = sphi 0, %s229
    %s244 = sphi 0, %s230
    %s248 = sphi 0, %s248
    %s250 = sphi 0, %s248
    %s251 = sphi 0, %s250
    %s265 = sphi 0, %s251
    %s269 = sphi 0, %s269
    %s271 = sphi 0, %s269
    %s272 = sphi 0, %s271
    %s286 = sphi 0, %s272
    %s290 = sphi 0, %s290
    %s292 = sphi 0, %s290
    %s293 = sphi 0, %s292
    %s307 = sphi 0, %s293
    %s311 = sphi 0, %s311
    %s313 = sphi 0, %s311
    %s314 = sphi 0, %s313
    %s328 = sphi 0, %s314
    %s334 = sphi 0, %s336
    %s337 = sphi 0, %s334
    %s338 = sphi 0, %s337
    %s354 = sphi 0, %s338
  $region4: #{channel_aware_coord_att.1} parent=0 // loop_header_branch
    %23 = sbr.rel (%p21) target = $region8
  $region5: #{channel_aware_coord_att.1} parent=0 // loop_body
    %s25 = ssub.s32 %s20, 1
    %s26 = ssub.s32 %s20, 2
    %s27 = sadd.s32 %s20, 1
    %s28 = ssub.s32 %s20, %s27
    %p29 = scmp.eq.s32.totalorder %s28, 0
    %s31 = sadd.s32 %s30, 1
    %s32 = scalar_select %p29, %s30, %s31
    %p35 = pneg %p29
    %p36 = scmp.eq.s32.totalorder %s20, 1
    %p37 = por %p35, %p36
    %p38 = scmp.ne.s32.totalorder %s30, %s33
    %p39 = scmp.eq.s32.totalorder %s20, 0
    %p40 = por %p38, %p39
    %p41 = scmp.ne.s32.totalorder %s30, %s33
    %p42 = scmp.eq.s32.totalorder %s25, 1
    %p43 = por %p41, %p42
    %p44 = scmp.ne.s32.totalorder %s33, %s34
    %p45 = scmp.eq.s32.totalorder %s25, 0
    %p46 = por %p44, %p45
    %p47 = scmp.ne.s32.totalorder %s33, %s34
    %p48 = scmp.eq.s32.totalorder %s26, 1
    %p49 = por %p47, %p48
    %p51 = scmp.ne.s32.totalorder %s34, %s50
    %p52 = scmp.eq.s32.totalorder %s26, 0
    %p53 = por %p51, %p52
    %s54 = ssub.s32 %s20, %s27
    %p55 = scmp.eq.s32.totalorder %s54, 0
    %s57 = sadd.s32 %s56, 1
    %s58 = scalar_select %p55, %s56, %s57
    %p61 = pneg %p55
    %p62 = scmp.eq.s32.totalorder %s20, 1
    %p63 = por %p61, %p62
    %p64 = scmp.ne.s32.totalorder %s56, %s59
    %p65 = scmp.eq.s32.totalorder %s20, 0
    %p66 = por %p64, %p65
    %p67 = scmp.ne.s32.totalorder %s56, %s59
    %p68 = scmp.eq.s32.totalorder %s25, 1
    %p69 = por %p67, %p68
    %p70 = scmp.ne.s32.totalorder %s59, %s60
    %p71 = scmp.eq.s32.totalorder %s25, 0
    %p72 = por %p70, %p71
    %p73 = scmp.ne.s32.totalorder %s59, %s60
    %p74 = scmp.eq.s32.totalorder %s26, 1
    %p75 = por %p73, %p74
    %p77 = scmp.ne.s32.totalorder %s60, %s76
    %p78 = scmp.eq.s32.totalorder %s26, 0
    %p79 = por %p77, %p78
    %s81 = sadd.s32 %s80, 1
    %p84 = scmp.eq.s32.totalorder %s20, 1
    %p85 = scmp.ne.s32.totalorder %s80, %s82
    %p86 = scmp.eq.s32.totalorder %s20, 0
    %p87 = por %p85, %p86
    %p88 = scmp.ne.s32.totalorder %s80, %s82
    %p89 = scmp.eq.s32.totalorder %s25, 1
    %p90 = por %p88, %p89
    %p91 = scmp.ne.s32.totalorder %s82, %s83
    %p92 = scmp.eq.s32.totalorder %s25, 0
    %p93 = por %p91, %p92
    %p94 = scmp.ne.s32.totalorder %s82, %s83
    %p95 = scmp.eq.s32.totalorder %s26, 1
    %p96 = por %p94, %p95
    %p98 = scmp.ne.s32.totalorder %s83, %s97
    %p99 = scmp.eq.s32.totalorder %s26, 0
    %p100 = por %p98, %p99
    %s102 = sadd.s32 %s101, 1
    %p105 = scmp.eq.s32.totalorder %s20, 1
    %p106 = scmp.ne.s32.totalorder %s101, %s103
    %p107 = scmp.eq.s32.totalorder %s20, 0
    %p108 = por %p106, %p107
    %p109 = scmp.ne.s32.totalorder %s101, %s103
    %p110 = scmp.eq.s32.totalorder %s25, 1
    %p111 = por %p109, %p110
    %p112 = scmp.ne.s32.totalorder %s103, %s104
    %p113 = scmp.eq.s32.totalorder %s25, 0
    %p114 = por %p112, %p113
    %p115 = scmp.ne.s32.totalorder %s103, %s104
    %p116 = scmp.eq.s32.totalorder %s26, 1
    %p117 = por %p115, %p116
    %p119 = scmp.ne.s32.totalorder %s104, %s118
    %p120 = scmp.eq.s32.totalorder %s26, 0
    %p121 = por %p119, %p120
    %s123 = sadd.s32 %s122, 1
    %p126 = scmp.eq.s32.totalorder %s20, 1
    %p127 = scmp.ne.s32.totalorder %s122, %s124
    %p128 = scmp.eq.s32.totalorder %s20, 0
    %p129 = por %p127, %p128
    %p130 = scmp.ne.s32.totalorder %s122, %s124
    %p131 = scmp.eq.s32.totalorder %s25, 1
    %p132 = por %p130, %p131
    %p133 = scmp.ne.s32.totalorder %s124, %s125
    %p134 = scmp.eq.s32.totalorder %s25, 0
    %p135 = por %p133, %p134
    %p136 = scmp.ne.s32.totalorder %s124, %s125
    %p137 = scmp.eq.s32.totalorder %s26, 1
    %p138 = por %p136, %p137
    %p140 = scmp.ne.s32.totalorder %s125, %s139
    %p141 = scmp.eq.s32.totalorder %s26, 0
    %p142 = por %p140, %p141
    %s144 = sadd.s32 %s143, 1
    %p147 = scmp.eq.s32.totalorder %s20, 1
    %p148 = scmp.ne.s32.totalorder %s143, %s145
    %p149 = scmp.eq.s32.totalorder %s20, 0
    %p150 = por %p148, %p149
    %p151 = scmp.ne.s32.totalorder %s143, %s145
    %p152 = scmp.eq.s32.totalorder %s25, 1
    %p153 = por %p151, %p152
    %p154 = scmp.ne.s32.totalorder %s145, %s146
    %p155 = scmp.eq.s32.totalorder %s25, 0
    %p156 = por %p154, %p155
    %p157 = scmp.ne.s32.totalorder %s145, %s146
    %p158 = scmp.eq.s32.totalorder %s26, 1
    %p159 = por %p157, %p158
    %p161 = scmp.ne.s32.totalorder %s146, %s160
    %p162 = scmp.eq.s32.totalorder %s26, 0
    %p163 = por %p161, %p162
    %s165 = sadd.s32 %s164, 1
    %p168 = scmp.eq.s32.totalorder %s20, 1
    %p169 = scmp.ne.s32.totalorder %s164, %s166
    %p170 = scmp.eq.s32.totalorder %s20, 0
    %p171 = por %p169, %p170
    %p172 = scmp.ne.s32.totalorder %s164, %s166
    %p173 = scmp.eq.s32.totalorder %s25, 1
    %p174 = por %p172, %p173
    %p175 = scmp.ne.s32.totalorder %s166, %s167
    %p176 = scmp.eq.s32.totalorder %s25, 0
    %p177 = por %p175, %p176
    %p178 = scmp.ne.s32.totalorder %s166, %s167
    %p179 = scmp.eq.s32.totalorder %s26, 1
    %p180 = por %p178, %p179
    %p182 = scmp.ne.s32.totalorder %s167, %s181
    %p183 = scmp.eq.s32.totalorder %s26, 0
    %p184 = por %p182, %p183
    %s186 = sadd.s32 %s185, 1
    %p189 = scmp.eq.s32.totalorder %s20, 1
    %p190 = scmp.ne.s32.totalorder %s185, %s187
    %p191 = scmp.eq.s32.totalorder %s20, 0
    %p192 = por %p190, %p191
    %p193 = scmp.ne.s32.totalorder %s185, %s187
    %p194 = scmp.eq.s32.totalorder %s25, 1
    %p195 = por %p193, %p194
    %p196 = scmp.ne.s32.totalorder %s187, %s188
    %p197 = scmp.eq.s32.totalorder %s25, 0
    %p198 = por %p196, %p197
    %p199 = scmp.ne.s32.totalorder %s187, %s188
    %p200 = scmp.eq.s32.totalorder %s26, 1
    %p201 = por %p199, %p200
    %p203 = scmp.ne.s32.totalorder %s188, %s202
    %p204 = scmp.eq.s32.totalorder %s26, 0
    %p205 = por %p203, %p204
    %s207 = sadd.s32 %s206, 1
    %p210 = scmp.eq.s32.totalorder %s20, 1
    %p211 = scmp.ne.s32.totalorder %s206, %s208
    %p212 = scmp.eq.s32.totalorder %s20, 0
    %p213 = por %p211, %p212
    %p214 = scmp.ne.s32.totalorder %s206, %s208
    %p215 = scmp.eq.s32.totalorder %s25, 1
    %p216 = por %p214, %p215
    %p217 = scmp.ne.s32.totalorder %s208, %s209
    %p218 = scmp.eq.s32.totalorder %s25, 0
    %p219 = por %p217, %p218
    %p220 = scmp.ne.s32.totalorder %s208, %s209
    %p221 = scmp.eq.s32.totalorder %s26, 1
    %p222 = por %p220, %p221
    %p224 = scmp.ne.s32.totalorder %s209, %s223
    %p225 = scmp.eq.s32.totalorder %s26, 0
    %p226 = por %p224, %p225
    %s228 = sadd.s32 %s227, 1
    %p231 = scmp.eq.s32.totalorder %s20, 1
    %p232 = scmp.ne.s32.totalorder %s227, %s229
    %p233 = scmp.eq.s32.totalorder %s20, 0
    %p234 = por %p232, %p233
    %p235 = scmp.ne.s32.totalorder %s227, %s229
    %p236 = scmp.eq.s32.totalorder %s25, 1
    %p237 = por %p235, %p236
    %p238 = scmp.ne.s32.totalorder %s229, %s230
    %p239 = scmp.eq.s32.totalorder %s25, 0
    %p240 = por %p238, %p239
    %p241 = scmp.ne.s32.totalorder %s229, %s230
    %p242 = scmp.eq.s32.totalorder %s26, 1
    %p243 = por %p241, %p242
    %p245 = scmp.ne.s32.totalorder %s230, %s244
    %p246 = scmp.eq.s32.totalorder %s26, 0
    %p247 = por %p245, %p246
    %s249 = sadd.s32 %s248, 1
    %p252 = scmp.eq.s32.totalorder %s20, 1
    %p253 = scmp.ne.s32.totalorder %s248, %s250
    %p254 = scmp.eq.s32.totalorder %s20, 0
    %p255 = por %p253, %p254
    %p256 = scmp.ne.s32.totalorder %s248, %s250
    %p257 = scmp.eq.s32.totalorder %s25, 1
    %p258 = por %p256, %p257
    %p259 = scmp.ne.s32.totalorder %s250, %s251
    %p260 = scmp.eq.s32.totalorder %s25, 0
    %p261 = por %p259, %p260
    %p262 = scmp.ne.s32.totalorder %s250, %s251
    %p263 = scmp.eq.s32.totalorder %s26, 1
    %p264 = por %p262, %p263
    %p266 = scmp.ne.s32.totalorder %s251, %s265
    %p267 = scmp.eq.s32.totalorder %s26, 0
    %p268 = por %p266, %p267
    %s270 = sadd.s32 %s269, 1
    %p273 = scmp.eq.s32.totalorder %s20, 1
    %p274 = scmp.ne.s32.totalorder %s269, %s271
    %p275 = scmp.eq.s32.totalorder %s20, 0
    %p276 = por %p274, %p275
    %p277 = scmp.ne.s32.totalorder %s269, %s271
    %p278 = scmp.eq.s32.totalorder %s25, 1
    %p279 = por %p277, %p278
    %p280 = scmp.ne.s32.totalorder %s271, %s272
    %p281 = scmp.eq.s32.totalorder %s25, 0
    %p282 = por %p280, %p281
    %p283 = scmp.ne.s32.totalorder %s271, %s272
    %p284 = scmp.eq.s32.totalorder %s26, 1
    %p285 = por %p283, %p284
    %p287 = scmp.ne.s32.totalorder %s272, %s286
    %p288 = scmp.eq.s32.totalorder %s26, 0
    %p289 = por %p287, %p288
    %s291 = sadd.s32 %s290, 1
    %p294 = scmp.eq.s32.totalorder %s20, 1
    %p295 = scmp.ne.s32.totalorder %s290, %s292
    %p296 = scmp.eq.s32.totalorder %s20, 0
    %p297 = por %p295, %p296
    %p298 = scmp.ne.s32.totalorder %s290, %s292
    %p299 = scmp.eq.s32.totalorder %s25, 1
    %p300 = por %p298, %p299
    %p301 = scmp.ne.s32.totalorder %s292, %s293
    %p302 = scmp.eq.s32.totalorder %s25, 0
    %p303 = por %p301, %p302
    %p304 = scmp.ne.s32.totalorder %s292, %s293
    %p305 = scmp.eq.s32.totalorder %s26, 1
    %p306 = por %p304, %p305
    %p308 = scmp.ne.s32.totalorder %s293, %s307
    %p309 = scmp.eq.s32.totalorder %s26, 0
    %p310 = por %p308, %p309
    %s312 = sadd.s32 %s311, 1
    %p315 = scmp.eq.s32.totalorder %s20, 1
    %p316 = scmp.ne.s32.totalorder %s311, %s313
    %p317 = scmp.eq.s32.totalorder %s20, 0
    %p318 = por %p316, %p317
    %p319 = scmp.ne.s32.totalorder %s311, %s313
    %p320 = scmp.eq.s32.totalorder %s25, 1
    %p321 = por %p319, %p320
    %p322 = scmp.ne.s32.totalorder %s313, %s314
    %p323 = scmp.eq.s32.totalorder %s25, 0
    %p324 = por %p322, %p323
    %p325 = scmp.ne.s32.totalorder %s313, %s314
    %p326 = scmp.eq.s32.totalorder %s26, 1
    %p327 = por %p325, %p326
    %p329 = scmp.ne.s32.totalorder %s314, %s328
    %p330 = scmp.eq.s32.totalorder %s26, 0
    %p331 = por %p329, %p330
    %s332 = ssub.s32 %s20, %s27
    %p333 = scmp.eq.s32.totalorder %s332, 0
    %s335 = sadd.s32 %s334, 1
    %s336 = scalar_select %p333, %s334, %s335
    %p339 = pneg %p333
    %p340 = scmp.eq.s32.totalorder %s20, 1
    %p341 = por %p339, %p340
    %p342 = scmp.ne.s32.totalorder %s334, %s337
    %p343 = scmp.eq.s32.totalorder %s20, 0
    %p344 = por %p342, %p343
    %p345 = scmp.ne.s32.totalorder %s334, %s337
    %p346 = scmp.eq.s32.totalorder %s25, 1
    %p347 = por %p345, %p346
    %p348 = scmp.ne.s32.totalorder %s337, %s338
    %p349 = scmp.eq.s32.totalorder %s25, 0
    %p350 = por %p348, %p349
    %p351 = scmp.ne.s32.totalorder %s337, %s338
    %p352 = scmp.eq.s32.totalorder %s26, 1
    %p353 = por %p351, %p352
    %p355 = scmp.ne.s32.totalorder %s338, %s354
    %p356 = scmp.eq.s32.totalorder %s26, 0
    %p357 = por %p355, %p356
    %p358 = scmp.le.s32.totalorder 1, %s20
    %p359 = scmp.lt.s32.totalorder %s20, 3
    %p360 = pnand %p358, %p359
    %p361 = pneg %p360
    // Predicated region
    $region9: #{channel_aware_coord_att.1} parent=5 // pred_check
      _
    $region10: #{channel_aware_coord_att.1} parent=5 // pred_check_branch
      %363 = sbr.rel (%p360) target = $region12
    $region11: #{channel_aware_coord_att.1} parent=5 // pred_region
      %s364 = ssub.s32 %s20, 1
      // Predicated region
      $region13: #{channel_aware_coord_att.1} parent=11 // pred_check
        %p365 = pneg %p93
      $region14: #{channel_aware_coord_att.1} parent=11 // pred_check_branch
        %367 = sbr.rel (%p365) target = $region16
      $region15: #{channel_aware_coord_att.1} parent=11 // pred_region
        _
      $region16: #{channel_aware_coord_att.1} parent=11 // pred_fallthru
        _
      // Predicated region
      $region17: #{channel_aware_coord_att.1} parent=11 // pred_check
        %p368 = pneg %p114
      $region18: #{channel_aware_coord_att.1} parent=11 // pred_check_branch
        %370 = sbr.rel (%p368) target = $region20
      $region19: #{channel_aware_coord_att.1} parent=11 // pred_region
        _
      $region20: #{channel_aware_coord_att.1} parent=11 // pred_fallthru
        _
      // Predicated region
      $region21: #{channel_aware_coord_att.1} parent=11 // pred_check
        %p371 = pneg %p135
      $region22: #{channel_aware_coord_att.1} parent=11 // pred_check_branch
        %373 = sbr.rel (%p371) target = $region24
      $region23: #{channel_aware_coord_att.1} parent=11 // pred_region
        _
      $region24: #{channel_aware_coord_att.1} parent=11 // pred_fallthru
        _
      // Predicated region
      $region25: #{channel_aware_coord_att.1} parent=11 // pred_check
        %p374 = pneg %p156
      $region26: #{channel_aware_coord_att.1} parent=11 // pred_check_branch
        %376 = sbr.rel (%p374) target = $region28
      $region27: #{channel_aware_coord_att.1} parent=11 // pred_region
        _
      $region28: #{channel_aware_coord_att.1} parent=11 // pred_fallthru
        _
      // Predicated region
      $region29: #{channel_aware_coord_att.1} parent=11 // pred_check
        %p377 = pneg %p177
      $region30: #{channel_aware_coord_att.1} parent=11 // pred_check_branch
        %379 = sbr.rel (%p377) target = $region32
      $region31: #{channel_aware_coord_att.1} parent=11 // pred_region
        _
      $region32: #{channel_aware_coord_att.1} parent=11 // pred_fallthru
        _
      // Predicated region
      $region33: #{channel_aware_coord_att.1} parent=11 // pred_check
        %p380 = pneg %p198
      $region34: #{channel_aware_coord_att.1} parent=11 // pred_check_branch
        %382 = sbr.rel (%p380) target = $region36
      $region35: #{channel_aware_coord_att.1} parent=11 // pred_region
        _
      $region36: #{channel_aware_coord_att.1} parent=11 // pred_fallthru
        _
      // Predicated region
      $region37: #{channel_aware_coord_att.1} parent=11 // pred_check
        %p383 = pneg %p219
      $region38: #{channel_aware_coord_att.1} parent=11 // pred_check_branch
        %385 = sbr.rel (%p383) target = $region40
      $region39: #{channel_aware_coord_att.1} parent=11 // pred_region
        _
      $region40: #{channel_aware_coord_att.1} parent=11 // pred_fallthru
        _
      // Predicated region
      $region41: #{channel_aware_coord_att.1} parent=11 // pred_check
        %p386 = pneg %p240
      $region42: #{channel_aware_coord_att.1} parent=11 // pred_check_branch
        %388 = sbr.rel (%p386) target = $region44
      $region43: #{channel_aware_coord_att.1} parent=11 // pred_region
        _
      $region44: #{channel_aware_coord_att.1} parent=11 // pred_fallthru
        _
      // Predicated region
      $region45: #{channel_aware_coord_att.1} parent=11 // pred_check
        %p389 = pneg %p261
      $region46: #{channel_aware_coord_att.1} parent=11 // pred_check_branch
        %391 = sbr.rel (%p389) target = $region48
      $region47: #{channel_aware_coord_att.1} parent=11 // pred_region
        _
      $region48: #{channel_aware_coord_att.1} parent=11 // pred_fallthru
        _
      // Predicated region
      $region49: #{channel_aware_coord_att.1} parent=11 // pred_check
        %p392 = pneg %p282
      $region50: #{channel_aware_coord_att.1} parent=11 // pred_check_branch
        %394 = sbr.rel (%p392) target = $region52
      $region51: #{channel_aware_coord_att.1} parent=11 // pred_region
        _
      $region52: #{channel_aware_coord_att.1} parent=11 // pred_fallthru
        _
      // Predicated region
      $region53: #{channel_aware_coord_att.1} parent=11 // pred_check
        %p395 = pneg %p303
      $region54: #{channel_aware_coord_att.1} parent=11 // pred_check_branch
        %397 = sbr.rel (%p395) target = $region56
      $region55: #{channel_aware_coord_att.1} parent=11 // pred_region
        _
      $region56: #{channel_aware_coord_att.1} parent=11 // pred_fallthru
        _
      // Predicated region
      $region57: #{channel_aware_coord_att.1} parent=11 // pred_check
        %p398 = pneg %p324
      $region58: #{channel_aware_coord_att.1} parent=11 // pred_check_branch
        %400 = sbr.rel (%p398) target = $region60
      $region59: #{channel_aware_coord_att.1} parent=11 // pred_region
        _
      $region60: #{channel_aware_coord_att.1} parent=11 // pred_fallthru
        _
    $region12: #{channel_aware_coord_att.1} parent=5 // pred_fallthru
      _
    %p401 = scmp.lt.s32.totalorder %s20, 2
    // Predicated region
    $region61: #{channel_aware_coord_att.1} parent=5 // pred_check
      %p402 = pneg %p401
    $region62: #{channel_aware_coord_att.1} parent=5 // pred_check_branch
      %404 = sbr.rel (%p402) target = $region64
    $region63: #{channel_aware_coord_att.1} parent=5 // pred_region
      // Predicated region
      $region65: #{channel_aware_coord_att.1} parent=63 // pred_check
        %p405 = pneg %p40
      $region66: #{channel_aware_coord_att.1} parent=63 // pred_check_branch
        %407 = sbr.rel (%p405) target = $region68
      $region67: #{channel_aware_coord_att.1} parent=63 // pred_region
        %p408 = scmp.lt.s32.totalorder %s20, 1
        %s409 = scalar_select %p408, %s20, 1
        %s410 = smul.addr %s409, 2
        %s411 = smul.addr %s410, 4
        %s412 = scalar_lea.vmem %s0, %s411
      $region68: #{channel_aware_coord_att.1} parent=63 // pred_fallthru
        _
      // Predicated region
      $region69: #{channel_aware_coord_att.1} parent=63 // pred_check
        %p413 = pneg %p66
      $region70: #{channel_aware_coord_att.1} parent=63 // pred_check_branch
        %415 = sbr.rel (%p413) target = $region72
      $region71: #{channel_aware_coord_att.1} parent=63 // pred_region
        %p416 = scmp.lt.s32.totalorder %s20, 1
        %s417 = scalar_select %p416, %s20, 1
        %s418 = smul.addr %s417, 2
        %s419 = smul.addr %s418, 8
        %s420 = scalar_lea.vmem %s1, %s419
      $region72: #{channel_aware_coord_att.1} parent=63 // pred_fallthru
        _
    $region64: #{channel_aware_coord_att.1} parent=5 // pred_fallthru
      _
    %p421 = scmp.le.s32.totalorder 1, %s20
    %p422 = scmp.lt.s32.totalorder %s20, 3
    %p423 = pnand %p421, %p422
    %p424 = pneg %p423
    // Predicated region
    $region73: #{channel_aware_coord_att.1} parent=5 // pred_check
      _
    $region74: #{channel_aware_coord_att.1} parent=5 // pred_check_branch
      %426 = sbr.rel (%p423) target = $region76
    $region75: #{channel_aware_coord_att.1} parent=5 // pred_region
      %s427 = ssub.s32 %s20, 1
      %p428 = scmp.lt.s32.totalorder %s25, 1
      %s429 = scalar_select %p428, %s25, 1
      %s430 = smul.addr %s429, 2
      %s431 = smul.addr %s430, 4
      %s432 = scalar_lea.vmem %s0, %s431
      %p433 = pneg %p46
      %p434 = pneg %p43
      %p435 = scmp.lt.s32.totalorder %s25, 1
      %s436 = scalar_select %p435, %s25, 1
      %s437 = smul.addr %s436, 2
      %s438 = smul.addr %s437, 8
      %s439 = scalar_lea.vmem %s1, %s438
      %p440 = pneg %p72
      %p441 = pneg %p69
      %p442 = pneg %p93
      %p443 = pneg %p90
      %p444 = pneg %p114
      %p445 = pneg %p111
      %p446 = pneg %p135
      %p447 = pneg %p132
      %p448 = pneg %p156
      %p449 = pneg %p153
      %p450 = pneg %p177
      %p451 = pneg %p174
      %p452 = pneg %p198
      %p453 = pneg %p195
      %p454 = pneg %p219
      %p455 = pneg %p216
      %p456 = pneg %p240
      %p457 = pneg %p237
      %p458 = pneg %p261
      %p459 = pneg %p258
      %p460 = pneg %p282
      %p461 = pneg %p279
      %p462 = pneg %p303
      %p463 = pneg %p300
      %p464 = pneg %p324
      %p465 = pneg %p321
      %p466 = pneg %p350
      %p467 = pneg %p347
      %p468 = scmp.lt.s32.totalorder %s25, 1
      %s469 = scalar_select %p468, %s25, 1
      %s470 = smul.addr %s469, 2
      %s471 = smul.addr %s470, 4
      %s472 = scalar_lea.vmem %s14, %s471
      %p473 = scmp.lt.s32.totalorder %s25, 1
      %s474 = scalar_select %p473, %s25, 1
      %s475 = smul.addr %s474, 2
      %s476 = smul.addr %s475, 4
      %s477 = scalar_lea.vmem %s0, %s476
      %p478 = scmp.lt.s32.totalorder %s25, 1
      %s479 = scalar_select %p478, %s25, 1
      %s480 = smul.addr %s479, 2
      %s481 = smul.addr %s480, 8
      %s482 = scalar_lea.vmem %s1, %s481
      %p483 = scmp.lt.s32.totalorder %s25, 1
      %s484 = scalar_select %p483, %s25, 1
      %s485 = smul.addr %s484, 2
      %s486 = smul.addr %s485, 4
      %s487 = scalar_lea.vmem %s14, %s486
      %v488 = vld [vmem:[%s2] sm:$0xff]
      %v489 = vld [vmem:[%s3] sm:$0xff]
      %v490 = vld [vmem:[%s4] sm:$0xff]
      %v491 = vld [vmem:[%s5] sm:$0xff]
      %v492 = vld [vmem:[%s6] sm:$0xff]
      %v493 = vld [vmem:[%s7] sm:$0xf]
      %v494 = vld [vmem:[%s8] sm:$0xf]
      %v495 = vld [vmem:[%s9] sm:$0xf]
      %v496 = vld [vmem:[%s10] sm:$0xff]
      %v497 = vld [vmem:[%s10 + $0x8] sm:$0xff]
      %v498 = vld [vmem:[%s10 + $0x10] sm:$0xff]
      %v499 = vld [vmem:[%s10 + $0x18] sm:$0xff]
      %v500 = vld [vmem:[%s10 + $0x20] sm:$0xff]
      %v501 = vld [vmem:[%s10 + $0x28] sm:$0xff]
      %v502 = vld [vmem:[%s10 + $0x30] sm:$0xff]
      %v503 = vld [vmem:[%s10 + $0x38] sm:$0xff]
      %v504 = vld [vmem:[%s10 + $0x40] sm:$0xff]
      %v505 = vld [vmem:[%s10 + $0x48] sm:$0xff]
      %v506 = vld [vmem:[%s10 + $0x50] sm:$0xff]
      %v507 = vld [vmem:[%s10 + $0x58] sm:$0xff]
      %v508 = vld [vmem:[%s10 + $0x60] sm:$0xff]
      %v509 = vld [vmem:[%s10 + $0x68] sm:$0xff]
      %v510 = vld [vmem:[%s10 + $0x70] sm:$0xff]
      %v511 = vld [vmem:[%s10 + $0x78] sm:$0xff]
      %v512 = vld [vmem:[%s10 + $0x80] sm:$0xff]
      %v513 = vld [vmem:[%s10 + $0x88] sm:$0xff]
      %v514 = vld [vmem:[%s10 + $0x90] sm:$0xff]
      %v515 = vld [vmem:[%s10 + $0x98] sm:$0xff]
      %v516 = vld [vmem:[%s10 + $0xa0] sm:$0xff]
      %v517 = vld [vmem:[%s10 + $0xa8] sm:$0xff]
      %v518 = vld [vmem:[%s10 + $0xb0] sm:$0xff]
      %v519 = vld [vmem:[%s10 + $0xb8] sm:$0xff]
      %v520 = vld [vmem:[%s10 + $0xc0] sm:$0xff]
      %v521 = vld [vmem:[%s10 + $0xc8] sm:$0xff]
      %v522 = vld [vmem:[%s10 + $0xd0] sm:$0xff]
      %v523 = vld [vmem:[%s10 + $0xd8] sm:$0xff]
      %v524 = vld [vmem:[%s10 + $0xe0] sm:$0xff]
      %v525 = vld [vmem:[%s10 + $0xe8] sm:$0xff]
      %v526 = vld [vmem:[%s10 + $0xf0] sm:$0xff]
      %v527 = vld [vmem:[%s10 + $0xf8] sm:$0xff]
      %v528 = vld [vmem:[%s11] sm:$0xff]
      %v529 = vld [vmem:[%s11 + $0x8] sm:$0xff]
      %v530 = vld [vmem:[%s11 + $0x10] sm:$0xff]
      %v531 = vld [vmem:[%s11 + $0x18] sm:$0xff]
      %v532 = vld [vmem:[%s11 + $0x20] sm:$0xff]
      %v533 = vld [vmem:[%s11 + $0x28] sm:$0xff]
      %v534 = vld [vmem:[%s11 + $0x30] sm:$0xff]
      %v535 = vld [vmem:[%s11 + $0x38] sm:$0xff]
      %v536 = vld [vmem:[%s11 + $0x40] sm:$0xff]
      %v537 = vld [vmem:[%s11 + $0x48] sm:$0xff]
      %v538 = vld [vmem:[%s11 + $0x50] sm:$0xff]
      %v539 = vld [vmem:[%s11 + $0x58] sm:$0xff]
      %v540 = vld [vmem:[%s11 + $0x60] sm:$0xff]
      %v541 = vld [vmem:[%s11 + $0x68] sm:$0xff]
      %v542 = vld [vmem:[%s11 + $0x70] sm:$0xff]
      %v543 = vld [vmem:[%s11 + $0x78] sm:$0xff]
      %v544 = vld [vmem:[%s11 + $0x80] sm:$0xff]
      %v545 = vld [vmem:[%s11 + $0x88] sm:$0xff]
      %v546 = vld [vmem:[%s11 + $0x90] sm:$0xff]
      %v547 = vld [vmem:[%s11 + $0x98] sm:$0xff]
      %v548 = vld [vmem:[%s11 + $0xa0] sm:$0xff]
      %v549 = vld [vmem:[%s11 + $0xa8] sm:$0xff]
      %v550 = vld [vmem:[%s11 + $0xb0] sm:$0xff]
      %v551 = vld [vmem:[%s11 + $0xb8] sm:$0xff]
      %v552 = vld [vmem:[%s11 + $0xc0] sm:$0xff]
      %v553 = vld [vmem:[%s11 + $0xc8] sm:$0xff]
      %v554 = vld [vmem:[%s11 + $0xd0] sm:$0xff]
      %v555 = vld [vmem:[%s11 + $0xd8] sm:$0xff]
      %v556 = vld [vmem:[%s11 + $0xe0] sm:$0xff]
      %v557 = vld [vmem:[%s11 + $0xe8] sm:$0xff]
      %v558 = vld [vmem:[%s11 + $0xf0] sm:$0xff]
      %v559 = vld [vmem:[%s11 + $0xf8] sm:$0xff]
      %v560 = vld [vmem:[%s12] sm:$0xff]
      %v561 = vld [vmem:[%s12 + $0x8] sm:$0xff]
      %v562 = vld [vmem:[%s12 + $0x10] sm:$0xff]
      %v563 = vld [vmem:[%s12 + $0x18] sm:$0xff]
      %v564 = vld [vmem:[%s13] sm:$0xff]
      %v565 = vld [vmem:[%s13 + $0x8] sm:$0xff]
      %v566 = vld [vmem:[%s13 + $0x10] sm:$0xff]
      %v567 = vld [vmem:[%s13 + $0x18] sm:$0xff]
      %v568 = vld [vmem:[%s477] sm:$0xff]
      %v569 = vld [vmem:[%s482] sm:$0xff]
      %v570 = vld [vmem:[%s482 + $0x8] sm:$0xff]
      %572 = vst [vmem:[#allocation1] ss:$2 sm:$0xff] %v568
      %v573 = vld.sshfl [vmem:[#allocation1] sm:$0xff pattern:$0x75316420]
      %v574 = vld.sshfl [vmem:[#allocation1 + $0x8] sm:$0xff pattern:$0x75316420]
      %577 = vmatpush.msra.mxu0 %v511
      %578 = vmatpush.msra.mxu0 %v510
      %579 = vmatpush.msra.mxu0 %v509
      %580 = vmatpush.msra.mxu0 %v508
      %581 = vmatpush.msra.mxu0 %v507
      %582 = vmatpush.msra.mxu0 %v506
      %583 = vmatpush.msra.mxu0 %v505
      %584 = vmatpush.msra.mxu0 %v504
      %585 = vmatpush.msra.mxu0 %v503
      %586 = vmatpush.msra.mxu0 %v502
      %587 = vmatpush.msra.mxu0 %v501
      %588 = vmatpush.msra.mxu0 %v500
      %589 = vmatpush.msra.mxu0 %v499
      %590 = vmatpush.msra.mxu0 %v498
      %591 = vmatpush.msra.mxu0 %v497
      %592 = vmatpush.msra.mxu0 %v496
      %593 = vmatmul.f32.gmra.mxu0 %v573
      %v594 = vpop.f32.mrf.mxu0
      %v595 = vadd.f32 0.0, %v594
      %596 = vdwg.mxu0
      %597 = vmatpush.msra.mxu0 %v527
      %598 = vmatpush.msra.mxu0 %v526
      %599 = vmatpush.msra.mxu0 %v525
      %600 = vmatpush.msra.mxu0 %v524
      %601 = vmatpush.msra.mxu0 %v523
      %602 = vmatpush.msra.mxu0 %v522
      %603 = vmatpush.msra.mxu0 %v521
      %604 = vmatpush.msra.mxu0 %v520
      %605 = vmatpush.msra.mxu0 %v519
      %606 = vmatpush.msra.mxu0 %v518
      %607 = vmatpush.msra.mxu0 %v517
      %608 = vmatpush.msra.mxu0 %v516
      %609 = vmatpush.msra.mxu0 %v515
      %610 = vmatpush.msra.mxu0 %v514
      %611 = vmatpush.msra.mxu0 %v513
      %612 = vmatpush.msra.mxu0 %v512
      %613 = vmatmul.f32.gmra.mxu0 %v574
      %v614 = vpop.f32.mrf.mxu0
      %v615 = vadd.f32 %v595, %v614
      %616 = vdwg.mxu0
      %617 = vst [vmem:[#allocation1] ss:$2 sm:$0xff] %v568
      %v618 = vld.sshfl [vmem:[#allocation1] sm:$0xff pattern:$0x75316420]
      %v619 = vld.sshfl [vmem:[#allocation1 + $0x8] sm:$0xff pattern:$0x75316420]
      %622 = vmatpush.msra.mxu0 %v543
      %623 = vmatpush.msra.mxu0 %v542
      %624 = vmatpush.msra.mxu0 %v541
      %625 = vmatpush.msra.mxu0 %v540
      %626 = vmatpush.msra.mxu0 %v539
      %627 = vmatpush.msra.mxu0 %v538
      %628 = vmatpush.msra.mxu0 %v537
      %629 = vmatpush.msra.mxu0 %v536
      %630 = vmatpush.msra.mxu0 %v535
      %631 = vmatpush.msra.mxu0 %v534
      %632 = vmatpush.msra.mxu0 %v533
      %633 = vmatpush.msra.mxu0 %v532
      %634 = vmatpush.msra.mxu0 %v531
      %635 = vmatpush.msra.mxu0 %v530
      %636 = vmatpush.msra.mxu0 %v529
      %637 = vmatpush.msra.mxu0 %v528
      %638 = vmatmul.f32.gmra.mxu0 %v618
      %v639 = vpop.f32.mrf.mxu0
      %v640 = vadd.f32 0.0, %v639
      %641 = vdwg.mxu0
      %642 = vmatpush.msra.mxu0 %v559
      %643 = vmatpush.msra.mxu0 %v558
      %644 = vmatpush.msra.mxu0 %v557
      %645 = vmatpush.msra.mxu0 %v556
      %646 = vmatpush.msra.mxu0 %v555
      %647 = vmatpush.msra.mxu0 %v554
      %648 = vmatpush.msra.mxu0 %v553
      %649 = vmatpush.msra.mxu0 %v552
      %650 = vmatpush.msra.mxu0 %v551
      %651 = vmatpush.msra.mxu0 %v550
      %652 = vmatpush.msra.mxu0 %v549
      %653 = vmatpush.msra.mxu0 %v548
      %654 = vmatpush.msra.mxu0 %v547
      %655 = vmatpush.msra.mxu0 %v546
      %656 = vmatpush.msra.mxu0 %v545
      %657 = vmatpush.msra.mxu0 %v544
      %658 = vmatmul.f32.gmra.mxu0 %v619
      %v659 = vpop.f32.mrf.mxu0
      %v660 = vadd.f32 %v640, %v659
      %661 = vdwg.mxu0
      %vm662 = vcmask 130048
      %v664 = vsel %vm662, %v489, 0
      %v667 = vsel %vm662, %v569, 0
      %v670 = vsel %vm662, %v570, 0
      %672 = vmatpush.xpose.msra.mxu0 0.0
      %673 = vmatpush.xpose.msra.mxu0 0.0
      %674 = vmatpush.xpose.msra.mxu0 0.0
      %675 = vmatpush.xpose.msra.mxu0 0.0
      %676 = vmatpush.xpose.msra.mxu0 0.0
      %677 = vmatpush.xpose.msra.mxu0 0.0
      %678 = vmatpush.xpose.msra.mxu0 0.0
      %679 = vmatpush.xpose.msra.mxu0 0.0
      %680 = vmatpush.xpose.msra.mxu0 0.0
      %681 = vmatpush.xpose.msra.mxu0 0.0
      %682 = vmatpush.xpose.msra.mxu0 0.0
      %683 = vmatpush.xpose.msra.mxu0 0.0
      %684 = vmatpush.xpose.msra.mxu0 0.0
      %685 = vmatpush.xpose.msra.mxu0 0.0
      %686 = vmatpush.xpose.msra.mxu0 %v670
      %687 = vmatpush.xpose.msra.mxu0 %v667
      %688 = vmatmul.f32.gmra.mxu0 %v664
      %v689 = vpop.f32.mrf.mxu0
      %v690 = vadd.f32 0.0, %v689
      %691 = vdwg.mxu0
      %vm692 = vcmask 31744
      %v694 = vsel %vm692, %v488, 0
      %vm696 = vcmask 1043456
      %v698 = vsel %vm696, %v615, 0
      %700 = vmatpush.msra.mxu0 0.0
      %701 = vmatpush.msra.mxu0 0.0
      %702 = vmatpush.msra.mxu0 0.0
      %703 = vmatpush.msra.mxu0 0.0
      %704 = vmatpush.msra.mxu0 0.0
      %705 = vmatpush.msra.mxu0 0.0
      %706 = vmatpush.msra.mxu0 0.0
      %707 = vmatpush.msra.mxu0 0.0
      %708 = vmatpush.msra.mxu0 0.0
      %709 = vmatpush.msra.mxu0 0.0
      %710 = vmatpush.msra.mxu0 0.0
      %711 = vmatpush.msra.mxu0 0.0
      %712 = vmatpush.msra.mxu0 0.0
      %713 = vmatpush.msra.mxu0 0.0
      %714 = vmatpush.msra.mxu0 0.0
      %715 = vmatpush.msra.mxu0 %v698
      %716 = vmatmul.f32.gmra.mxu0 %v694
      %v717 = vpop.f32.mrf.mxu0
      %v718 = vadd.f32 %v690, %v717
      %719 = vdwg.mxu0
      %721 = vset.pattern.permute.xlu0 0
      %722 = vperm.xlu0 %721, %v492
      %v723 = vpop.permute.xlu0 %722
      %v725 = vmul.f32 %v718, %v723
      %726 = vset.pattern.permute.xlu0 1
      %727 = vperm.xlu0 %726, %v492
      %v728 = vpop.permute.xlu0 %727
      %v730 = vadd.f32 %v725, %v728
      %v731 = vadd.f32 %v730, 3.0
      %v732 = vmax.f32 %v731, 0.0
      %v733 = vmin.f32 %v732, 6.0
      %v734 = vmul.f32 %v733, 0.16666667
      %v735 = vmul.f32 %v730, %v734
      %737 = vset.pattern.permute.xlu0 0
      %738 = vperm.xlu0 %737, %v495
      %v739 = vpop.permute.xlu0 %738
      %vm741 = vcmask 64512
      %v743 = vsel %vm741, %v493, 0
      %745 = vmatpush.msra.mxu0 0.0
      %746 = vmatpush.msra.mxu0 0.0
      %747 = vmatpush.msra.mxu0 0.0
      %748 = vmatpush.msra.mxu0 0.0
      %749 = vmatpush.msra.mxu0 0.0
      %750 = vmatpush.msra.mxu0 0.0
      %751 = vmatpush.msra.mxu0 0.0
      %752 = vmatpush.msra.mxu0 0.0
      %753 = vmatpush.msra.mxu0 0.0
      %754 = vmatpush.msra.mxu0 0.0
      %755 = vmatpush.msra.mxu0 0.0
      %756 = vmatpush.msra.mxu0 0.0
      %757 = vmatpush.msra.mxu0 0.0
      %758 = vmatpush.msra.mxu0 0.0
      %759 = vmatpush.msra.mxu0 0.0
      %760 = vmatpush.msra.mxu0 %v735
      %761 = vmatmul.f32.gmra.mxu0 %v743
      %v762 = vpop.f32.mrf.mxu0
      %v763 = vadd.f32 %v739, %v762
      %764 = vdwg.mxu0
      %v765 = vsub.f32 0.0, %v763
      %v766 = vmul.f32 %v765, 1.442695
      %v767 = vpow.pop %v766
      %v768 = vadd.f32 %v767, 1.0
      %v769 = vrcp.pop %v768
      %v771 = vsel %vm662, %v491, 0
      %773 = vmatpush.msra.mxu0 0.0
      %774 = vmatpush.msra.mxu0 0.0
      %775 = vmatpush.msra.mxu0 0.0
      %776 = vmatpush.msra.mxu0 0.0
      %777 = vmatpush.msra.mxu0 0.0
      %778 = vmatpush.msra.mxu0 0.0
      %779 = vmatpush.msra.mxu0 0.0
      %780 = vmatpush.msra.mxu0 0.0
      %781 = vmatpush.msra.mxu0 0.0
      %782 = vmatpush.msra.mxu0 0.0
      %783 = vmatpush.msra.mxu0 0.0
      %784 = vmatpush.msra.mxu0 0.0
      %785 = vmatpush.msra.mxu0 0.0
      %786 = vmatpush.msra.mxu0 0.0
      %787 = vmatpush.msra.mxu0 %v570
      %788 = vmatpush.msra.mxu0 %v569
      %789 = vmatmul.f32.gmra.mxu0 %v771
      %v790 = vpop.f32.mrf.mxu0
      %v791 = vadd.f32 0.0, %v790
      %792 = vdwg.mxu0
      %v794 = vsel %vm692, %v490, 0
      %v797 = vsel %vm696, %v660, 0
      %799 = vmatpush.msra.mxu0 0.0
      %800 = vmatpush.msra.mxu0 0.0
      %801 = vmatpush.msra.mxu0 0.0
      %802 = vmatpush.msra.mxu0 0.0
      %803 = vmatpush.msra.mxu0 0.0
      %804 = vmatpush.msra.mxu0 0.0
      %805 = vmatpush.msra.mxu0 0.0
      %806 = vmatpush.msra.mxu0 0.0
      %807 = vmatpush.msra.mxu0 0.0
      %808 = vmatpush.msra.mxu0 0.0
      %809 = vmatpush.msra.mxu0 0.0
      %810 = vmatpush.msra.mxu0 0.0
      %811 = vmatpush.msra.mxu0 0.0
      %812 = vmatpush.msra.mxu0 0.0
      %813 = vmatpush.msra.mxu0 0.0
      %814 = vmatpush.msra.mxu0 %v797
      %815 = vmatmul.f32.gmra.mxu0 %v794
      %v816 = vpop.f32.mrf.mxu0
      %v817 = vadd.f32 %v791, %v816
      %818 = vdwg.mxu0
      %v819 = vmul.f32 %v817, %v723
      %820 = vset.pattern.permute.xlu0 2
      %821 = vperm.xlu0 %820, %v492
      %v822 = vpop.permute.xlu0 %821
      %v824 = vadd.f32 %v819, %v822
      %v825 = vadd.f32 %v824, 3.0
      %v826 = vmax.f32 %v825, 0.0
      %v827 = vmin.f32 %v826, 6.0
      %v828 = vmul.f32 %v827, 0.16666667
      %v829 = vmul.f32 %v824, %v828
      %830 = vset.pattern.permute.xlu0 1
      %831 = vperm.xlu0 %830, %v495
      %v832 = vpop.permute.xlu0 %831
      %v835 = vsel %vm741, %v494, 0
      %837 = vmatpush.msra.mxu0 0.0
      %838 = vmatpush.msra.mxu0 0.0
      %839 = vmatpush.msra.mxu0 0.0
      %840 = vmatpush.msra.mxu0 0.0
      %841 = vmatpush.msra.mxu0 0.0
      %842 = vmatpush.msra.mxu0 0.0
      %843 = vmatpush.msra.mxu0 0.0
      %844 = vmatpush.msra.mxu0 0.0
      %845 = vmatpush.msra.mxu0 0.0
      %846 = vmatpush.msra.mxu0 0.0
      %847 = vmatpush.msra.mxu0 0.0
      %848 = vmatpush.msra.mxu0 0.0
      %849 = vmatpush.msra.mxu0 0.0
      %850 = vmatpush.msra.mxu0 0.0
      %851 = vmatpush.msra.mxu0 0.0
      %852 = vmatpush.msra.mxu0 %v829
      %853 = vmatmul.f32.gmra.mxu0 %v835
      %v854 = vpop.f32.mrf.mxu0
      %v855 = vadd.f32 %v832, %v854
      %856 = vdwg.mxu0
      %v857 = vsub.f32 0.0, %v855
      %v858 = vmul.f32 %v857, 1.442695
      %v859 = vpow.pop %v858
      %v860 = vadd.f32 %v859, 1.0
      %v861 = vrcp.pop %v860
      %v863 = vsel %vm662, %v769, 0
      %865 = vmatpush.msra.mxu0 0.0
      %866 = vmatpush.msra.mxu0 0.0
      %867 = vmatpush.msra.mxu0 0.0
      %868 = vmatpush.msra.mxu0 0.0
      %869 = vmatpush.msra.mxu0 0.0
      %870 = vmatpush.msra.mxu0 0.0
      %871 = vmatpush.msra.mxu0 0.0
      %872 = vmatpush.msra.mxu0 0.0
      %873 = vmatpush.msra.mxu0 0.0
      %874 = vmatpush.msra.mxu0 0.0
      %875 = vmatpush.msra.mxu0 0.0
      %876 = vmatpush.msra.mxu0 0.0
      %877 = vmatpush.msra.mxu0 0.0
      %878 = vmatpush.msra.mxu0 0.0
      %879 = vmatpush.msra.mxu0 %v562
      %880 = vmatpush.msra.mxu0 %v560
      %881 = vmatmul.f32.gmra.mxu0 %v863
      %v882 = vpop.f32.mrf.mxu0
      %v883 = vadd.f32 0.0, %v882
      %884 = vdwg.mxu0
      %885 = vmatpush.msra.mxu0 0.0
      %886 = vmatpush.msra.mxu0 0.0
      %887 = vmatpush.msra.mxu0 0.0
      %888 = vmatpush.msra.mxu0 0.0
      %889 = vmatpush.msra.mxu0 0.0
      %890 = vmatpush.msra.mxu0 0.0
      %891 = vmatpush.msra.mxu0 0.0
      %892 = vmatpush.msra.mxu0 0.0
      %893 = vmatpush.msra.mxu0 0.0
      %894 = vmatpush.msra.mxu0 0.0
      %895 = vmatpush.msra.mxu0 0.0
      %896 = vmatpush.msra.mxu0 0.0
      %897 = vmatpush.msra.mxu0 0.0
      %898 = vmatpush.msra.mxu0 0.0
      %899 = vmatpush.msra.mxu0 %v563
      %900 = vmatpush.msra.mxu0 %v561
      %901 = vmatmul.f32.gmra.mxu0 %v863
      %v902 = vpop.f32.mrf.mxu0
      %v903 = vadd.f32 0.0, %v902
      %904 = vdwg.mxu0
      %v906 = vsel %vm662, %v861, 0
      %908 = vmatpush.msra.mxu0 0.0
      %909 = vmatpush.msra.mxu0 0.0
      %910 = vmatpush.msra.mxu0 0.0
      %911 = vmatpush.msra.mxu0 0.0
      %912 = vmatpush.msra.mxu0 0.0
      %913 = vmatpush.msra.mxu0 0.0
      %914 = vmatpush.msra.mxu0 0.0
      %915 = vmatpush.msra.mxu0 0.0
      %916 = vmatpush.msra.mxu0 0.0
      %917 = vmatpush.msra.mxu0 0.0
      %918 = vmatpush.msra.mxu0 0.0
      %919 = vmatpush.msra.mxu0 0.0
      %920 = vmatpush.msra.mxu0 0.0
      %921 = vmatpush.msra.mxu0 0.0
      %922 = vmatpush.msra.mxu0 %v566
      %923 = vmatpush.msra.mxu0 %v564
      %924 = vmatmul.f32.gmra.mxu0 %v906
      %v925 = vpop.f32.mrf.mxu0
      %v926 = vadd.f32 0.0, %v925
      %927 = vdwg.mxu0
      %928 = vmatpush.msra.mxu0 0.0
      %929 = vmatpush.msra.mxu0 0.0
      %930 = vmatpush.msra.mxu0 0.0
      %931 = vmatpush.msra.mxu0 0.0
      %932 = vmatpush.msra.mxu0 0.0
      %933 = vmatpush.msra.mxu0 0.0
      %934 = vmatpush.msra.mxu0 0.0
      %935 = vmatpush.msra.mxu0 0.0
      %936 = vmatpush.msra.mxu0 0.0
      %937 = vmatpush.msra.mxu0 0.0
      %938 = vmatpush.msra.mxu0 0.0
      %939 = vmatpush.msra.mxu0 0.0
      %940 = vmatpush.msra.mxu0 0.0
      %941 = vmatpush.msra.mxu0 0.0
      %942 = vmatpush.msra.mxu0 %v567
      %943 = vmatpush.msra.mxu0 %v565
      %944 = vmatmul.f32.gmra.mxu0 %v906
      %v945 = vpop.f32.mrf.mxu0
      %v946 = vadd.f32 0.0, %v945
      %947 = vdwg.mxu0
      %v950 = vrot.slane %v903, 4
      %v951 = vsel %vm696, %v883, %v950
      %v953 = vmul.f32 %v568, %v951
      %v956 = vrot.slane %v946, 4
      %v957 = vsel %vm696, %v926, %v956
      %v959 = vmul.f32 %v953, %v957
      %960 = vst [vmem:[%s487] sm:$0xff] %v959
      %p961 = scmp.lt.s32.totalorder %s25, 1
      %s962 = scalar_select %p961, %s25, 1
      %s963 = smul.addr %s962, 2
      %s964 = smul.addr %s963, 4
      %s965 = scalar_lea.vmem %s14, %s964
      // Predicated region
      $region77: #{channel_aware_coord_att.1} parent=75 // pred_check
        %p966 = pneg %p347
      $region78: #{channel_aware_coord_att.1} parent=75 // pred_check_branch
        %968 = sbr.rel (%p966) target = $region80
      $region79: #{channel_aware_coord_att.1} parent=75 // pred_region
        _
      $region80: #{channel_aware_coord_att.1} parent=75 // pred_fallthru
        _
    $region76: #{channel_aware_coord_att.1} parent=5 // pred_fallthru
      _
    %p969 = scmp.le.s32.totalorder 2, %s20
    // Predicated region
    $region81: #{channel_aware_coord_att.1} parent=5 // pred_check
      %p970 = pneg %p969
    $region82: #{channel_aware_coord_att.1} parent=5 // pred_check_branch
      %972 = sbr.rel (%p970) target = $region84
    $region83: #{channel_aware_coord_att.1} parent=5 // pred_region
      %s973 = ssub.s32 %s20, 2
      // Predicated region
      $region85: #{channel_aware_coord_att.1} parent=83 // pred_check
        %p974 = pneg %p353
      $region86: #{channel_aware_coord_att.1} parent=83 // pred_check_branch
        %976 = sbr.rel (%p974) target = $region88
      $region87: #{channel_aware_coord_att.1} parent=83 // pred_region
        %p977 = scmp.lt.s32.totalorder %s26, 1
        %s978 = scalar_select %p977, %s26, 1
        %s979 = smul.addr %s978, 2
        %s980 = smul.addr %s979, 4
        %s981 = scalar_lea.vmem %s14, %s980
      $region88: #{channel_aware_coord_att.1} parent=83 // pred_fallthru
        _
    $region84: #{channel_aware_coord_att.1} parent=5 // pred_fallthru
      _
  $region6: #{channel_aware_coord_att.1} parent=0 // loop_footer
    %s24 = sadd.s32 1, %s20
  $region7: #{channel_aware_coord_att.1} parent=0 // loop_footer_branch
    %19 = sbr.rel target = $region3
  $region8: #{channel_aware_coord_att.1} parent=0 // loop_exit
    _

</llo_original>
